<compile_context>
chip_gen: v6e
topology: v6e:2x2x1
jax: 0.10.0
libtpu: 0.0.40
codegen_flags: <defaults>
</compile_context>

<pallas_src>
import math

import jax
import jax.numpy as jnp
from jax.experimental import pallas as pl
from jax.experimental.pallas import tpu as pltpu


# ----------------------------- gate kernel ---------------------------------
def gate_kernel(tok_ref, emb_ref, idx_ref):
    tok = tok_ref[...].astype(jnp.float32)            # (B, D_lang)
    emb = emb_ref[...].astype(jnp.float32)            # (n_tasks, D_lang)
    # F.normalize(p=2, dim=-1): x / max(||x||, eps)  ==  x * rsqrt(max(||x||^2, eps^2))
    eps2 = 1e-24
    tok_n = tok * jax.lax.rsqrt(
        jnp.maximum(jnp.sum(tok * tok, axis=-1, keepdims=True), eps2))
    emb_n = emb * jax.lax.rsqrt(
        jnp.maximum(jnp.sum(emb * emb, axis=-1, keepdims=True), eps2))
    # tok_n @ emb_n.T without materializing the transpose.
    sims = jax.lax.dot_general(
        tok_n, emb_n, dimension_numbers=(((1,), (1,)), ((), ())),
        preferred_element_type=jnp.float32)           # (B, n_tasks)
    n_tasks = sims.shape[-1]
    # Fused argmax with first-max tie-break (same as torch.max / jnp.argmax).
    max_val = jnp.max(sims, axis=-1, keepdims=True)
    col = jax.lax.broadcasted_iota(jnp.int32, sims.shape, 1)
    idx = jnp.min(jnp.where(sims >= max_val, col, jnp.int32(n_tasks)),
                  axis=-1, keepdims=True)
    # NaN / degenerate guard: never emit an out-of-range task id (would become an
    # OOB weight-block index in the routed MLP's data-dependent index_maps).
    idx = jnp.minimum(idx, n_tasks - 1)
    idx_ref[...] = idx.astype(jnp.int32)


def gate_indices(language_token, routing_embeddings):
    B = language_token.shape[0]
    # TODO(synk): for very large B, tile this over the batch with a "parallel" grid
    #             axis instead of loading the whole (B, D_lang) token matrix untiled.
    idx = pl.pallas_call(
        gate_kernel,
        out_shape=jax.ShapeDtypeStruct((B, 1), jnp.int32),
        in_specs=[pl.BlockSpec(memory_space=pltpu.MemorySpace.VMEM),
                  pl.BlockSpec(memory_space=pltpu.MemorySpace.VMEM)],
        out_specs=pl.BlockSpec(memory_space=pltpu.MemorySpace.VMEM),
    )(language_token, routing_embeddings)
    return idx[:, 0]                                   # (B,) int32


# ----------------------- grouped (task-routed) MLP kernel --------------------
def grouped_mlp_kernel(tile_group_ref,                 # scalar-prefetch (SMEM), drives index_maps
                       x_ref, w1_ref, w2_ref, w3_ref, b_ref, o_ref):
    del tile_group_ref
    x = x_ref[...]                                     # (tile_rows, in)  bf16
    w1 = w1_ref[0]                                     # (in, hid)        bf16
    w2 = w2_ref[0]                                     # (hid, hid)       bf16
    w3 = w3_ref[0]                                     # (hid, out)       bf16
    b = b_ref[0]                                       # (1, 2*hid + out) f32
    hid = w1.shape[-1]
    out = w3.shape[-1]
    b1 = b[:, :hid]
    b2 = b[:, hid:2 * hid]
    b3 = b[:, 2 * hid:2 * hid + out]

    h1 = jnp.dot(x, w1, preferred_element_type=jnp.float32) + b1
    h1 = jnp.maximum(h1, 0.0).astype(x.dtype)
    h2 = jnp.dot(h1, w2, preferred_element_type=jnp.float32) + b2
    h2 = jnp.maximum(h2, 0.0).astype(x.dtype)
    y = jnp.dot(h2, w3, preferred_element_type=jnp.float32) + b3
    o_ref[...] = jnp.tanh(y).astype(o_ref.dtype)       # true-width store (no lane pad)


def routed_mlp(x, indices, params, *, target_tile_rows=256):
    """Run each batch element's (T, in) rows through its selected task's MLP.

    Task-grouped, row-tiled grouped matmul: batch elements are sorted by task and
    padded per group to whole tiles of `bm` elements (bm*T rows); grid = (n_tiles,).
    """
    B, T, in_ = x.shape
    w1, w2, w3, b_all = params["w1"], params["w2"], params["w3"], params["b_all"]
    n_tasks, _, hidden = w1.shape
    out = w3.shape[-1]
    wb = b_all.shape[-1]

    # ---------- static tile geometry ----------
    # TODO(synk): pick target_tile_rows per generation (256 for v6e/v7x 2x256^2 MXU,
    #             128 for v5e 4x128^2) via pltpu.get_tpu_info().
    step = 8 // math.gcd(T, 8)                    # keeps (bm*T) % 8 == 0 (sublane tiling)
    bm = max(1, target_tile_rows // T)            # batch elements per row tile
    bm = max(step, (bm // step) * step)
    bm = min(bm, ((B + step - 1) // step) * step) # no point exceeding ~B
    tile_rows = bm * T
    # Static upper bound on sum_g ceil(count_g / bm).
    n_tiles = B // bm + min(n_tasks, B)
    b_pad = n_tiles * bm                          # padded (task-sorted) batch size

    # ---------- routing metadata (plain JAX, tiny) ----------
    indices = indices.astype(jnp.int32)
    counts = jnp.bincount(indices, length=n_tasks).astype(jnp.int32)        # (n_tasks,)
    tiles_per_group = (counts + bm - 1) // bm
    group_tile_start = jnp.cumsum(tiles_per_group) - tiles_per_group
    group_dst_start = group_tile_start * bm       # first padded slot of each group
    group_src_start = jnp.cumsum(counts) - counts # first sorted index of each group

    order = jnp.argsort(indices).astype(jnp.int32)            # batch elems sorted by task
    sorted_ids = indices[order]
    rank_in_group = jnp.arange(B, dtype=jnp.int32) - group_src_start[sorted_ids]
    dst_slot = group_dst_start[sorted_ids] + rank_in_group    # padded slot of order[i]

    # padded-layout gather map (padding slots duplicate element 0; results discarded)
    src_elem = jnp.zeros((b_pad,), jnp.int32).at[dst_slot].set(order)
    # per-tile task id (unused / overflow tiles clamped to a valid id)
    tile_ends = jnp.cumsum(tiles_per_group)
    tile_group = jnp.minimum(
        jnp.searchsorted(tile_ends, jnp.arange(n_tiles, dtype=jnp.int32), side="right"),
        n_tasks - 1).astype(jnp.int32)
    # where each original batch element's result lands in the padded layout
    gather_back = jnp.zeros((B,), jnp.int32).at[order].set(dst_slot)

    # Gather x into task-sorted padded order; fuse the bf16 cast into this pass.
    x_sorted = jnp.take(x, src_elem, axis=0).reshape(b_pad * T, in_).astype(jnp.bfloat16)

    # ---------- VMEM budget (double-buffered blocks + margin) ----------
    # TODO(synk): for hidden >= ~2048 add a K-reduction grid axis (last, "arbitrary")
    #             with an f32 VMEM accumulator so per-step weights fit v7x's 64 MiB VMEM.
    blk_bytes = ((in_ * hidden + hidden * hidden + hidden * out) * 2   # bf16 weights
                 + wb * 4                                              # bias block
                 + tile_rows * in_ * 2 + tile_rows * out * 4)          # x / y blocks
    vmem_limit = int(min(max(2 * blk_bytes + (2 << 20), 16 * 1024 * 1024),
                         64 * 1024 * 1024))

    grid_spec = pltpu.PrefetchScalarGridSpec(
        num_scalar_prefetch=1,
        grid=(n_tiles,),
        in_specs=[
            # row tile of task-sorted activations (lane dim = full in_, sublanes % 8)
            pl.BlockSpec((tile_rows, in_), lambda t, tg: (t, 0)),
            # per-task weights: consecutive tiles with the same group id skip the re-DMA
            pl.BlockSpec((1, in_, hidden), lambda t, tg: (tg[t], 0, 0)),
            pl.BlockSpec((1, hidden, hidden), lambda t, tg: (tg[t], 0, 0)),
            pl.BlockSpec((1, hidden, out), lambda t, tg: (tg[t], 0, 0)),
            # all three biases in a single pre-concatenated block (one descriptor)
            pl.BlockSpec((1, 1, wb), lambda t, tg: (tg[t], 0, 0)),
        ],
        # disjoint output row tiles -> safe to mark the grid axis "parallel"
        out_specs=pl.BlockSpec((tile_rows, out), lambda t, tg: (t, 0)),
    )

    y = pl.pallas_call(
        grouped_mlp_kernel,
        out_shape=jax.ShapeDtypeStruct((b_pad * T, out), jnp.float32),
        grid_spec=grid_spec,
        compiler_params=pltpu.CompilerParams(
            dimension_semantics=("parallel",),
            vmem_limit_bytes=vmem_limit),
    )(tile_group, x_sorted, w1, w2, w3, b_all)

    # Un-permute (and drop padding slots) back to the original batch order.
    y = y.reshape(b_pad, T, out)
    return jnp.take(y, gather_back, axis=0)                    # (B, T, out)


# ------------------------------ full forward --------------------------------
def task_specific_head_forward(x, language_token, params, stddev=None):
    """Returns (mu, std_scalar, task_indices) of the TruncatedNormal the module builds."""
    indices = gate_indices(language_token, params["routing_embeddings"])    # (B,) int32
    mu = routed_mlp(x, indices, params)                                     # (B, T, out)
    std = jnp.float32(0.1 if stddev is None else stddev)
    # TODO(synk): utils.TruncatedNormal has no Pallas equivalent; we return its (mu, std)
    #             parameters; std stays a scalar (broadcast lazily downstream).
    return mu, std, indices


# ----------------------------- parameter init --------------------------------
def _linear_init(key, fan_in, fan_out):
    # PyTorch nn.Linear default: U(-1/sqrt(fan_in), 1/sqrt(fan_in)); stored as (in, out)
    kw, kb = jax.random.split(key)
    bound = 1.0 / math.sqrt(fan_in)
    w = jax.random.uniform(kw, (fan_in, fan_out), jnp.float32, -bound, bound)
    b = jax.random.uniform(kb, (1, fan_out), jnp.float32, -bound, bound)
    return w, b


def init_params(key, input_size, output_size, n_tasks, language_token_dim, hidden_size):
    """Weights stored pre-cast to bf16 and biases pre-concatenated (hoisted out of forward)."""
    keys = jax.random.split(key, n_tasks * 3 + 1)
    w1s, b1s, w2s, b2s, w3s, b3s = [], [], [], [], [], []
    for t in range(n_tasks):
        w1, b1 = _linear_init(keys[3 * t + 0], input_size, hidden_size)
        w2, b2 = _linear_init(keys[3 * t + 1], hidden_size, hidden_size)
        w3, b3 = _linear_init(keys[3 * t + 2], hidden_size, output_size)
        w1s.append(w1); b1s.append(b1)
        w2s.append(w2); b2s.append(b2)
        w3s.append(w3); b3s.append(b3)
    routing_embeddings = jax.random.normal(
        keys[-1], (n_tasks, language_token_dim), jnp.float32)
    b_all = jnp.concatenate(
        [jnp.stack(b1s), jnp.stack(b2s), jnp.stack(b3s)], axis=-1)  # (n_tasks,1,2*hid+out) f32
    return {
        "w1": jnp.stack(w1s).astype(jnp.bfloat16),   # (n_tasks, in,  hid)
        "w2": jnp.stack(w2s).astype(jnp.bfloat16),   # (n_tasks, hid, hid)
        "w3": jnp.stack(w3s).astype(jnp.bfloat16),   # (n_tasks, hid, out)
        "b_all": b_all,
        "routing_embeddings": routing_embeddings,
    }


# ------------------------------- reference -----------------------------------
def reference_forward(x, language_token, params):
    """Pure-JAX reference with the same cast points as the kernel (bf16 MXU, f32 accum)."""
    eps = 1e-12
    tok_n = language_token / jnp.maximum(
        jnp.linalg.norm(language_token, axis=-1, keepdims=True), eps)
    emb = params["routing_embeddings"]
    emb_n = emb / jnp.maximum(jnp.linalg.norm(emb, axis=-1, keepdims=True), eps)
    sims = tok_n @ emb_n.T
    indices = jnp.argmax(sims, axis=-1).astype(jnp.int32)

    hid = params["w1"].shape[-1]
    out = params["w3"].shape[-1]
    b1 = params["b_all"][:, :, :hid]
    b2 = params["b_all"][:, :, hid:2 * hid]
    b3 = params["b_all"][:, :, 2 * hid:2 * hid + out]

    def one_head(xb, idx):
        w1, w2, w3 = params["w1"][idx], params["w2"][idx], params["w3"][idx]
        xb_c = xb.astype(jnp.bfloat16)
        h1 = jnp.maximum(jnp.dot(xb_c, w1, preferred_element_type=jnp.float32) + b1[idx], 0.0)
        h1 = h1.astype(jnp.bfloat16)
        h2 = jnp.maximum(jnp.dot(h1, w2, preferred_element_type=jnp.float32) + b2[idx], 0.0)
        h2 = h2.astype(jnp.bfloat16)
        return jnp.tanh(jnp.dot(h2, w3, preferred_element_type=jnp.float32) + b3[idx])

    mu = jax.vmap(one_head)(x, indices)
    return mu, indices


# ---------------------------------- main --------------------------------------
if __name__ == "__main__":
    B, T = 2, 8
    input_size = 32
    hidden_size = 32
    output_size = 8
    n_tasks = 4
    language_token_dim = 16

    key = jax.random.PRNGKey(0)
    k_params, k_x, k_tok = jax.random.split(key, 3)

    params = init_params(k_params, input_size, output_size, n_tasks,
                         language_token_dim, hidden_size)
    x = jax.random.normal(k_x, (B, T, input_size), jnp.float32)
    language_token = jax.random.normal(k_tok, (B, language_token_dim), jnp.float32)

    mu, std, indices = task_specific_head_forward(x, language_token, params)
    mu = jax.block_until_ready(mu)
    indices = jax.block_until_ready(indices)

    mu_ref, idx_ref = reference_forward(x, language_token, params)

    assert mu.shape == (B, T, output_size)
    assert bool(jnp.all(indices == idx_ref))
    assert abs(float(std) - 0.1) < 1e-6
    assert bool(jnp.allclose(mu, mu_ref, atol=2e-2, rtol=2e-2))

    print("KERNEL_OK")
</pallas_src>

<mosaic_0001>
module attributes {stable_mosaic.version = 11 : i64} {
  func.func @gate_kernel(%arg0: memref<2x16xf32, #tpu.memory_space<vmem>>, %arg1: memref<4x16xf32, #tpu.memory_space<vmem>>, %arg2: memref<2x1xi32, #tpu.memory_space<vmem>>) attributes {dimension_semantics = [], scalar_prefetch = 0 : i64, scratch_operands = 0 : i64, tpu.core_type = #tpu.core_type<tc>} {
    %c0 = arith.constant 0 : index
    %c0_0 = arith.constant 0 : index
    %0 = vector.load %arg0[%c0, %c0_0] : memref<2x16xf32, #tpu.memory_space<vmem>>, vector<2x16xf32>
    %c0_1 = arith.constant 0 : index
    %c0_2 = arith.constant 0 : index
    %1 = vector.load %arg1[%c0_1, %c0_2] : memref<4x16xf32, #tpu.memory_space<vmem>>, vector<4x16xf32>
    %2 = arith.mulf %0, %0 : vector<2x16xf32>
    %cst = arith.constant dense<0.000000e+00> : vector<2xf32>
    %3 = vector.multi_reduction <add>, %2, %cst [1] : vector<2x16xf32> to vector<2xf32>
    %4 = vector.shape_cast %3 : vector<2xf32> to vector<2x1xf32>
    %cst_3 = arith.constant 1.000000e-24 : f32
    %5 = vector.broadcast %cst_3 : f32 to vector<2x1xf32>
    %6 = arith.maximumf %4, %5 : vector<2x1xf32>
    %7 = math.rsqrt %6 : vector<2x1xf32>
    %8 = vector.broadcast %7 : vector<2x1xf32> to vector<2x16xf32>
    %9 = arith.mulf %0, %8 : vector<2x16xf32>
    %10 = arith.mulf %1, %1 : vector<4x16xf32>
    %cst_4 = arith.constant dense<0.000000e+00> : vector<4xf32>
    %11 = vector.multi_reduction <add>, %10, %cst_4 [1] : vector<4x16xf32> to vector<4xf32>
    %12 = vector.shape_cast %11 : vector<4xf32> to vector<4x1xf32>
    %cst_5 = arith.constant 1.000000e-24 : f32
    %13 = vector.broadcast %cst_5 : f32 to vector<4x1xf32>
    %14 = arith.maximumf %12, %13 : vector<4x1xf32>
    %15 = math.rsqrt %14 : vector<4x1xf32>
    %16 = vector.broadcast %15 : vector<4x1xf32> to vector<4x16xf32>
    %17 = arith.mulf %1, %16 : vector<4x16xf32>
    %cst_6 = arith.constant dense<0.000000e+00> : vector<2x4xf32>
    %18 = tpu.matmul %9, %17, %cst_6 {dimension_numbers = #tpu.dot_dimension_numbers<[1], [1], [0], [0], [0, 0, 1, 0], [], []>} : vector<2x16xf32>, vector<4x16xf32>, vector<2x4xf32> -> vector<2x4xf32>
    %cst_7 = arith.constant dense<0xFF800000> : vector<2xf32>
    %19 = vector.multi_reduction <maximumf>, %18, %cst_7 [1] : vector<2x4xf32> to vector<2xf32>
    %20 = vector.shape_cast %19 : vector<2xf32> to vector<2x1xf32>
    %21 = tpu.iota {dimensions = array<i32: 1>} : vector<2x4xi32>
    %22 = vector.broadcast %20 : vector<2x1xf32> to vector<2x4xf32>
    %23 = arith.cmpf oge, %18, %22 : vector<2x4xf32>
    %c4_i32 = arith.constant 4 : i32
    %24 = vector.broadcast %c4_i32 : i32 to vector<2x4xi32>
    %25 = arith.select %23, %21, %24 : vector<2x4xi1>, vector<2x4xi32>
    %cst_8 = arith.constant dense<2147483647> : vector<2xi32>
    %26 = vector.multi_reduction <minsi>, %25, %cst_8 [1] : vector<2x4xi32> to vector<2xi32>
    %27 = vector.shape_cast %26 : vector<2xi32> to vector<2x1xi32>
    %c3_i32 = arith.constant 3 : i32
    %28 = vector.broadcast %c3_i32 : i32 to vector<2x1xi32>
    %29 = arith.minsi %27, %28 : vector<2x1xi32>
    %c0_9 = arith.constant 0 : index
    %c0_10 = arith.constant 0 : index
    %30 = vector.load %arg2[%c0_9, %c0_10] : memref<2x1xi32, #tpu.memory_space<vmem>>, vector<2x1xi32>
    tpu.vector_store %arg2[%c0_9, %c0_10], %29 {strides = array<i32>} : memref<2x1xi32, #tpu.memory_space<vmem>>, vector<2x1xi32>,
    return
  }
}

</mosaic_0001>

<llo_original>
// kernel: tpu_custom_call.1
$region0: #{tpu_custom_call.1}
  #allocation0 [shape = 'u32[]', space=smem, size = 0x4, offset = 0x4, fixed_abs, tag = 'smem constant byte address 0x4 - core index']
  #allocation1 [shape = 'u32[144,128]{1,0:T(1,128)}', space=vmem, size = 0x12000, scoped, tag = 'internal scratch']
  %s0 = inlined_call_operand.hbm [shape: f32[2,16], index: 0, kind: input, shape index: {}]
  %s1 = inlined_call_operand.hbm [shape: f32[4,16], index: 1, kind: input, shape index: {}]
  %s2 = inlined_call_operand.vmem [shape: s32[2,1], index: 2, kind: output, shape index: {}]
  %s3 = sld [smem:[#allocation0]]
  $region26: #{tpu_custom_call.1} parent=0
    _
  %s5 = ssub.s32 1, %s3
  %s6 = scalar_select 0, %s5, %s3
  $region1: #{tpu_custom_call.1} parent=0
    #allocation2 [shape = 'u8[1024]{0}', space=vmem, size = 0x400, scoped, tag = 'input window, operand 0, single buffered']
    #allocation3 [shape = 's32[1]{0}', space=sflag, size = 0x4, scoped, tag = 'scoped memory for tpu_custom_call.1']
    #allocation4 [shape = 'u8[2048]{0}', space=vmem, size = 0x800, scoped, tag = 'input window, operand 1, single buffered']
    #allocation5 [shape = 's32[1]{0}', space=sflag, size = 0x4, scoped, tag = 'scoped memory for tpu_custom_call.1']
    %7 = vsyncpa [#allocation3], 0
    %8 = vsyncpa [#allocation5], 0
    // Predicated region
    $region2: #{tpu_custom_call.1} parent=1 // pred_check
      _
    $region3: #{tpu_custom_call.1} parent=1 // pred_check_branch
      %10 = sbr.rel (0) target = $region5
    $region4: #{tpu_custom_call.1} parent=1 // pred_region
      %s12 = ssub.s32 32, 32
      %13 = vsyncadd [#allocation3], %s12
      %s15 = sshll.u32 [#allocation2], 4
      %s16 = int_to_ptr.vmem [resolvable:$true] %s15
      %18 = dma.hbm_to_vmem [thread:$0]  %s0, 32, %s16, [#allocation3]
    $region5: #{tpu_custom_call.1} parent=1 // pred_fallthru
      _
    // Predicated region
    $region6: #{tpu_custom_call.1} parent=1 // pred_check
      _
    $region7: #{tpu_custom_call.1} parent=1 // pred_check_branch
      %20 = sbr.rel (0) target = $region9
    $region8: #{tpu_custom_call.1} parent=1 // pred_region
      %s22 = ssub.s32 64, 64
      %23 = vsyncadd [#allocation5], %s22
      %s25 = sshll.u32 [#allocation4], 4
      %s26 = int_to_ptr.vmem [resolvable:$true] %s25
      %28 = dma.hbm_to_vmem [thread:$0]  %s1, 64, %s26, [#allocation5]
    $region9: #{tpu_custom_call.1} parent=1 // pred_fallthru
      _
    // Predicated region
    $region10: #{tpu_custom_call.1} parent=1 // pred_check
      _
    $region11: #{tpu_custom_call.1} parent=1 // pred_check_branch
      %30 = sbr.rel (0) target = $region13
    $region12: #{tpu_custom_call.1} parent=1 // pred_region
      %31 = dma.done [#allocation3], 32
    $region13: #{tpu_custom_call.1} parent=1 // pred_fallthru
      _
    // Predicated region
    $region14: #{tpu_custom_call.1} parent=1 // pred_check
      _
    $region15: #{tpu_custom_call.1} parent=1 // pred_check_branch
      %33 = sbr.rel (0) target = $region17
    $region16: #{tpu_custom_call.1} parent=1 // pred_region
      %34 = dma.done [#allocation5], 64
    $region17: #{tpu_custom_call.1} parent=1 // pred_fallthru
      _
    %v35 = vld [vmem:[#allocation2] sm:$0x3]
    %v36 = vld [vmem:[#allocation4] sm:$0xf]
    %v37 = vmul.f32 %v35, %v35
    %vm38 = vcmask 123904
    %v39 = vsel %vm38, %v37, 0.0
    %40 = vadd.xlane.f32.xlu0 %v39
    %v41 = vpop.xlane.xlu0 %40
    %v42 = vmax.f32 %v41, 1e-24
    %v43 = vrsqrt.pop %v42
    %v44 = vmul.f32 %v35, %v43
    %v45 = vmul.f32 %v36, %v36
    %vm46 = vcmask 125952
    %v47 = vsel %vm46, %v45, 0.0
    %48 = vadd.xlane.f32.xlu0 %v47
    %v49 = vpop.xlane.xlu0 %48
    %v50 = vmax.f32 %v49, 1e-24
    %v51 = vrsqrt.pop %v50
    %v52 = vmul.f32 %v36, %v51
    %vm53 = vcmask 130048
    %v55 = vsel %vm53, %v44, 0
    %v58 = vsel %vm53, %v52, 0
    %60 = vmatprep.subr.mxu0 0.0
    %61 = vmatpush1.xpose.msra.mxu0 0.0
    %62 = vmatprep.subr.mxu0 0.0
    %63 = vmatpush1.xpose.msra.mxu0 0.0
    %64 = vmatprep.subr.mxu0 0.0
    %65 = vmatpush1.xpose.msra.mxu0 0.0
    %66 = vmatprep.subr.mxu0 0.0
    %67 = vmatpush1.xpose.msra.mxu0 0.0
    %68 = vmatprep.subr.mxu0 0.0
    %69 = vmatpush1.xpose.msra.mxu0 0.0
    %70 = vmatprep.subr.mxu0 0.0
    %71 = vmatpush1.xpose.msra.mxu0 0.0
    %72 = vmatprep.subr.mxu0 0.0
    %73 = vmatpush1.xpose.msra.mxu0 0.0
    %74 = vmatprep.subr.mxu0 0.0
    %75 = vmatpush1.xpose.msra.mxu0 0.0
    %76 = vmatprep.subr.mxu0 0.0
    %77 = vmatpush1.xpose.msra.mxu0 0.0
    %78 = vmatprep.subr.mxu0 0.0
    %79 = vmatpush1.xpose.msra.mxu0 0.0
    %80 = vmatprep.subr.mxu0 0.0
    %81 = vmatpush1.xpose.msra.mxu0 0.0
    %82 = vmatprep.subr.mxu0 0.0
    %83 = vmatpush1.xpose.msra.mxu0 0.0
    %84 = vmatprep.subr.mxu0 0.0
    %85 = vmatpush1.xpose.msra.mxu0 0.0
    %86 = vmatprep.subr.mxu0 0.0
    %87 = vmatpush1.xpose.msra.mxu0 0.0
    %88 = vmatprep.subr.mxu0 0.0
    %89 = vmatpush1.xpose.msra.mxu0 0.0
    %90 = vmatprep.subr.mxu0 0.0
    %91 = vmatpush1.xpose.msra.mxu0 %v58
    %92 = vmatprep.subr.mxu0 0.0
    %93 = vmatpush2.xpose.msra.mxu0 0.0
    %94 = vmatprep.subr.mxu0 0.0
    %95 = vmatpush2.xpose.msra.mxu0 0.0
    %96 = vmatprep.subr.mxu0 0.0
    %97 = vmatpush2.xpose.msra.mxu0 0.0
    %98 = vmatprep.subr.mxu0 0.0
    %99 = vmatpush2.xpose.msra.mxu0 0.0
    %100 = vmatprep.subr.mxu0 0.0
    %101 = vmatpush2.xpose.msra.mxu0 0.0
    %102 = vmatprep.subr.mxu0 0.0
    %103 = vmatpush2.xpose.msra.mxu0 0.0
    %104 = vmatprep.subr.mxu0 0.0
    %105 = vmatpush2.xpose.msra.mxu0 0.0
    %106 = vmatprep.subr.mxu0 0.0
    %107 = vmatpush2.xpose.msra.mxu0 0.0
    %108 = vmatprep.subr.mxu0 0.0
    %109 = vmatpush2.xpose.msra.mxu0 0.0
    %110 = vmatprep.subr.mxu0 0.0
    %111 = vmatpush2.xpose.msra.mxu0 0.0
    %112 = vmatprep.subr.mxu0 0.0
    %113 = vmatpush2.xpose.msra.mxu0 0.0
    %114 = vmatprep.subr.mxu0 0.0
    %115 = vmatpush2.xpose.msra.mxu0 0.0
    %116 = vmatprep.subr.mxu0 0.0
    %117 = vmatpush2.xpose.msra.mxu0 0.0
    %118 = vmatprep.subr.mxu0 0.0
    %119 = vmatpush2.xpose.msra.mxu0 0.0
    %120 = vmatprep.subr.mxu0 0.0
    %121 = vmatpush2.xpose.msra.mxu0 0.0
    %122 = vmatprep.subr.mxu0 0.0
    %123 = vmatpush2.xpose.msra.mxu0 0.0
    %124 = vmatprep.mubr.f32.mxu0 0.0
    %125 = vmatmul.mubr.f32.gmra.mxu0 %v55
    %v126 = vpop.f32.mrf.mxu0
    %v127 = vadd.f32 0.0, %v126
    %v128 = vpop.f32.mrf.mxu0
    %129 = vdwg.mxu0
    %vm130 = vcmask 25600
    %v131 = vsel %vm130, %v127, -inf
    %132 = vmax.xlane.f32.xlu0 %v131
    %v133 = vpop.xlane.xlu0 %132
    %v134 = vlaneseq
    %v135 = vand.u32 %v134, 127
    %vm136 = vcmp.ge.f32.partialorder %v127, %v133
    %v137 = vsel %vm136, %v135, 4
    %v138 = vsel %vm130, %v137, 2147483647
    %v139 = vand.u32 %v138, 65535
    %v140 = vshra.s32 %v138, 16
    %v141 = vcvt.s32.f32 %v139
    %v142 = vcvt.s32.f32 %v140
    %143 = vmin.xlane.f32.xlu0 %v142
    %v144 = vpop.xlane.xlu0 %143
    %vm145 = vcmp.eq.f32.partialorder %v142, %v144
    %v146 = vsel %vm145, %v141, inf
    %147 = vmin.xlane.f32.xlu0 %v146
    %v148 = vpop.xlane.xlu0 %147
    %v149 = vcvt.f32.s32 %v148
    %v150 = vcvt.f32.s32 %v144
    %v151 = vshll.u32 %v150, 16
    %v152 = vadd.s32 %v151, %v149
    %vm153 = vcmp.lt.s32.totalorder %v152, 3
    %v154 = vsel %vm153, %v152, 3
    %vm155 = vcmask 1024
    %156 = vst.msk [vmem:[%s2] sm:$0x3] %vm155, %v154
    // Predicated region
    $region18: #{tpu_custom_call.1} parent=1 // pred_check
      _
    $region19: #{tpu_custom_call.1} parent=1 // pred_check_branch
      %158 = sbr.rel (0) target = $region21
    $region20: #{tpu_custom_call.1} parent=1 // pred_region
      _
    $region21: #{tpu_custom_call.1} parent=1 // pred_fallthru
      _
    // Predicated region
    $region22: #{tpu_custom_call.1} parent=1 // pred_check
      _
    $region23: #{tpu_custom_call.1} parent=1 // pred_check_branch
      %160 = sbr.rel (0) target = $region25
    $region24: #{tpu_custom_call.1} parent=1 // pred_region
      _
    $region25: #{tpu_custom_call.1} parent=1 // pred_fallthru
      _
    %161 = vsyncpa [#allocation3], 1
    %162 = vsyncpa [#allocation5], 1

</llo_original>
